<compile_context>
chip_gen: v7x
topology: tpu7x:2x2x1
jax: 0.10.0
libtpu: 0.0.40
codegen_flags: <defaults>
</compile_context>

<pallas_src>
import functools

import jax
import jax.numpy as jnp
from jax.experimental import pallas as pl
from jax.experimental.pallas import tpu as pltpu


def _round_up(a, b):
    return (a + b - 1) // b * b


def body_vae_kernel(n_valid, lp,
                    xc_ref, c_ref, eps_ref,
                    we_ref, be_ref,
                    wmulv_ref, bmulv_ref,
                    wdz_ref, wdc_ref, bd_ref,
                    wo_ref, bo_ref,
                    recover_ref, kl_ref):
    i = pl.program_id(0)
    t = xc_ref.shape[0]                      # rows in this tile (static)

    xc = xc_ref[...]                         # (t, Dxcp) = [motion | sparse], bf16
    c = c_ref[...]                           # (t, Dcp)  sparse alone (for decoder)

    # --- encoder: fused [x|c] @ W_enc ---
    h = jnp.dot(xc, we_ref[...], preferred_element_type=jnp.float32) + be_ref[...]
    h = jnp.maximum(h, 0.0)

    # --- fused mu/logvar projection: lanes [0:lp] = mu, [lp:2lp] = logvar ---
    mulv = (jnp.dot(h.astype(wmulv_ref.dtype), wmulv_ref[...],
                    preferred_element_type=jnp.float32) + bmulv_ref[...])
    mu = mulv[:, :lp]
    logvar = mulv[:, lp:]

    # --- reparameterize (deterministic eps streamed in; exp computed once) ---
    std = jnp.exp(0.5 * logvar)
    z = mu + std * eps_ref[...].astype(jnp.float32)

    # --- decoder: z @ Wd_z + c @ Wd_c ---
    hd = (jnp.dot(z.astype(wdz_ref.dtype), wdz_ref[...],
                  preferred_element_type=jnp.float32)
          + jnp.dot(c, wdc_ref[...], preferred_element_type=jnp.float32)
          + bd_ref[...])
    hd = jnp.maximum(hd, 0.0)

    recover_ref[...] = (jnp.dot(hd.astype(wo_ref.dtype), wo_ref[...],
                                preferred_element_type=jnp.float32)
                        + bo_ref[...]).astype(recover_ref.dtype)

    # --- KL partial for this tile: -0.5 * sum(1 + logvar - mu^2 - var) ---
    # Padded latent lanes give mu=0, logvar=0 -> term == 0 automatically.
    # Padded (out-of-range) rows are masked out explicitly.
    row = jax.lax.broadcasted_iota(jnp.int32, (t, lp), 0) + i * t
    valid = (row < n_valid).astype(jnp.float32)
    term = (1.0 + logvar - mu * mu - std * std) * valid

    # Collapse rows into an (8, lp) partial with static-slice VALU adds only;
    # the final cross-lane reduction happens once in the wrapper.
    partial = jnp.zeros((8, lp), jnp.float32)
    for g in range(t // 8):
        partial = partial + term[g * 8:(g + 1) * 8, :]
    kl_ref[...] = partial


def body_vae_forward(motion, sparse, params, eps, *,
                     tile_rows=512, compute_dtype=jnp.bfloat16):
    """motion: (bs, seq, J, 6), sparse: (bs, seq, Dc), eps: (bs, seq, L)."""
    bs, seq, J, C = motion.shape
    N = bs * seq
    Dm = J * C
    Dc = sparse.shape[-1]
    H = params['W_enc_x'].shape[1]
    L = params['W_mu'].shape[1]

    LANE = 128
    Hp = _round_up(H, LANE)
    Lp = _round_up(L, LANE)
    Dmp = _round_up(Dm, LANE)
    Dcp = _round_up(Dc, LANE)
    Dxcp = _round_up(Dm + Dc, LANE)

    # Row tiling: multiples of 16 (bf16 sublane packing); small problems use a
    # single grid step with the whole N resident.
    tile_rows = max(16, _round_up(tile_rows, 16))
    tile = min(tile_rows, _round_up(N, 16))
    Np = _round_up(N, tile)
    num_tiles = Np // tile

    def pad2(a, rows, cols):
        return jnp.pad(a, ((0, rows - a.shape[0]), (0, cols - a.shape[1])))

    x = motion.reshape(N, Dm).astype(jnp.float32)
    c = sparse.reshape(N, Dc).astype(jnp.float32)
    e = eps.reshape(N, L).astype(jnp.float32)

    xc_p = pad2(jnp.concatenate([x, c], axis=-1), Np, Dxcp).astype(compute_dtype)
    c_p = pad2(c, Np, Dcp).astype(compute_dtype)
    e_p = pad2(e, Np, Lp).astype(compute_dtype)

    # --- pack / pad weights (zero padding keeps padded lanes inert) ---
    W_enc = pad2(jnp.concatenate([params['W_enc_x'], params['W_enc_c']], axis=0),
                 Dxcp, Hp).astype(compute_dtype)
    b_enc = pad2(params['b_enc'], 1, Hp).astype(jnp.float32)

    W_mulv = jnp.zeros((Hp, 2 * Lp), jnp.float32)
    W_mulv = W_mulv.at[:H, :L].set(params['W_mu'])
    W_mulv = W_mulv.at[:H, Lp:Lp + L].set(params['W_lv'])
    W_mulv = W_mulv.astype(compute_dtype)
    b_mulv = jnp.zeros((1, 2 * Lp), jnp.float32)
    b_mulv = b_mulv.at[:, :L].set(params['b_mu'])
    b_mulv = b_mulv.at[:, Lp:Lp + L].set(params['b_lv'])

    W_dec_z = pad2(params['W_dec_z'], Lp, Hp).astype(compute_dtype)
    W_dec_c = pad2(params['W_dec_c'], Dcp, Hp).astype(compute_dtype)
    b_dec = pad2(params['b_dec'], 1, Hp).astype(jnp.float32)
    W_out = pad2(params['W_out'], Hp, Dmp).astype(compute_dtype)
    b_out = pad2(params['b_out'], 1, Dmp).astype(jnp.float32)

    def rows(width):
        return pl.BlockSpec((tile, width), lambda i: (i, 0))

    def full(shape):
        return pl.BlockSpec(shape, lambda i: (0, 0))

    recover_p, kl_parts = pl.pallas_call(
        functools.partial(body_vae_kernel, N, Lp),
        out_shape=(jax.ShapeDtypeStruct((Np, Dmp), jnp.float32),
                   jax.ShapeDtypeStruct((num_tiles * 8, Lp), jnp.float32)),
        grid_spec=pltpu.PrefetchScalarGridSpec(
            num_scalar_prefetch=0,
            grid=(num_tiles,),
            in_specs=[rows(Dxcp), rows(Dcp), rows(Lp),
                      full((Dxcp, Hp)), full((1, Hp)),
                      full((Hp, 2 * Lp)), full((1, 2 * Lp)),
                      full((Lp, Hp)), full((Dcp, Hp)), full((1, Hp)),
                      full((Hp, Dmp)), full((1, Dmp))],
            out_specs=(pl.BlockSpec((tile, Dmp), lambda i: (i, 0)),
                       pl.BlockSpec((8, Lp), lambda i: (i, 0)))),
        compiler_params=pltpu.CompilerParams(
            dimension_semantics=("parallel",)),
    )(xc_p, c_p, e_p,
      W_enc, b_enc, W_mulv, b_mulv,
      W_dec_z, W_dec_c, b_dec, W_out, b_out)

    # Final cross-lane KL reduction + normalization (mean over N * L).
    loss_z = -0.5 * jnp.sum(kl_parts) / float(N * L)
    recover = recover_p[:N, :Dm].reshape(bs, seq, J, C)
    return {'recover': recover, 'loss_z': loss_z}


def init_params(key, Dm, Dc, H, L):
    ks = jax.random.split(key, 8)
    s = 0.05
    return {
        'W_enc_x': s * jax.random.normal(ks[0], (Dm, H), jnp.float32),
        'W_enc_c': s * jax.random.normal(ks[1], (Dc, H), jnp.float32),
        'b_enc':   jnp.zeros((1, H), jnp.float32),
        'W_mu':    s * jax.random.normal(ks[2], (H, L), jnp.float32),
        'b_mu':    jnp.zeros((1, L), jnp.float32),
        'W_lv':    s * jax.random.normal(ks[3], (H, L), jnp.float32),
        'b_lv':    jnp.zeros((1, L), jnp.float32),
        'W_dec_z': s * jax.random.normal(ks[4], (L, H), jnp.float32),
        'W_dec_c': s * jax.random.normal(ks[5], (Dc, H), jnp.float32),
        'b_dec':   jnp.zeros((1, H), jnp.float32),
        'W_out':   s * jax.random.normal(ks[6], (H, Dm), jnp.float32),
        'b_out':   jnp.zeros((1, Dm), jnp.float32),
    }


def trainer_forward(batch, params, eps):
    """Mirrors BodyVAETrainer.forward for a dict batch."""
    body_motion = batch['body_local_rot6d']          # (bs, seq, J*6)
    sparse = batch['sparse']                         # (bs, seq, Dc)
    bs, seq = body_motion.shape[:2]
    motion_input = body_motion.reshape(bs, seq, -1, 6)
    # NOTE: _perturb_data's result is discarded in the PyTorch code (and the
    # default MASK_RATIO/NOISE_COEF are 0.0), so it is a no-op here.
    # TODO(synk): external create_model/body_vae and SMPLX/checkpoint loading
    # are not translatable; a canonical conditional VAE stands in for body_vae.
    out = body_vae_forward(motion_input, sparse, params, eps)
    return {'recover': out['recover'], 'loss_z': out['loss_z']}


if __name__ == "__main__":
    bs, seq, J, C = 2, 8, 22, 6     # body_local_rot6d: 22 joints x rot6d
    Dc = 54                         # sparse tracking signal per frame
    H, L = 64, 32                   # VAE hidden / latent dims

    key = jax.random.PRNGKey(0)
    k_motion, k_sparse, k_eps, k_params = jax.random.split(key, 4)

    body_motion = jax.random.normal(k_motion, (bs, seq, J * C), jnp.float32)
    sparse = jax.random.normal(k_sparse, (bs, seq, Dc), jnp.float32)
    eps = jax.random.normal(k_eps, (bs, seq, L), jnp.float32)
    params = init_params(k_params, J * C, Dc, H, L)

    batch = {'body_local_rot6d': body_motion, 'sparse': sparse}
    out = trainer_forward(batch, params, eps)
    jax.block_until_ready(out)

    assert out['recover'].shape == (bs, seq, J, C)
    assert out['loss_z'].shape == ()
    assert bool(jnp.isfinite(out['recover']).all())
    assert bool(jnp.isfinite(out['loss_z']))
    print("KERNEL_OK")
</pallas_src>

<mosaic_0001>
module attributes {stable_mosaic.version = 11 : i64} {
  func.func @body_vae_kernel(%arg0: i32, %arg1: memref<16x256xbf16, #tpu.memory_space<vmem>>, %arg2: memref<16x128xbf16, #tpu.memory_space<vmem>>, %arg3: memref<16x128xbf16, #tpu.memory_space<vmem>>, %arg4: memref<256x128xbf16, #tpu.memory_space<vmem>>, %arg5: memref<1x128xf32, #tpu.memory_space<vmem>>, %arg6: memref<128x256xbf16, #tpu.memory_space<vmem>>, %arg7: memref<1x256xf32, #tpu.memory_space<vmem>>, %arg8: memref<128x128xbf16, #tpu.memory_space<vmem>>, %arg9: memref<128x128xbf16, #tpu.memory_space<vmem>>, %arg10: memref<1x128xf32, #tpu.memory_space<vmem>>, %arg11: memref<128x256xbf16, #tpu.memory_space<vmem>>, %arg12: memref<1x256xf32, #tpu.memory_space<vmem>>, %arg13: memref<16x256xf32, #tpu.memory_space<vmem>>, %arg14: memref<8x128xf32, #tpu.memory_space<vmem>>) attributes {dimension_semantics = [#tpu.dimension_semantics<parallel>], iteration_bounds = array<i64: 1>, scalar_prefetch = 0 : i64, scratch_operands = 0 : i64, tpu.core_type = #tpu.core_type<tc>, window_params = [{transform_indices = @transform_0, window_bounds = array<i64: 16, 256>}, {transform_indices = @transform_1, window_bounds = array<i64: 16, 128>}, {transform_indices = @transform_2, window_bounds = array<i64: 16, 128>}, {pipeline_mode = #tpu.pipeline_mode<synchronous>, transform_indices = @transform_3, window_bounds = array<i64: 256, 128>}, {pipeline_mode = #tpu.pipeline_mode<synchronous>, transform_indices = @transform_4, window_bounds = array<i64: 1, 128>}, {pipeline_mode = #tpu.pipeline_mode<synchronous>, transform_indices = @transform_5, window_bounds = array<i64: 128, 256>}, {pipeline_mode = #tpu.pipeline_mode<synchronous>, transform_indices = @transform_6, window_bounds = array<i64: 1, 256>}, {pipeline_mode = #tpu.pipeline_mode<synchronous>, transform_indices = @transform_7, window_bounds = array<i64: 128, 128>}, {pipeline_mode = #tpu.pipeline_mode<synchronous>, transform_indices = @transform_8, window_bounds = array<i64: 128, 128>}, {pipeline_mode = #tpu.pipeline_mode<synchronous>, transform_indices = @transform_9, window_bounds = array<i64: 1, 128>}, {pipeline_mode = #tpu.pipeline_mode<synchronous>, transform_indices = @transform_10, window_bounds = array<i64: 128, 256>}, {pipeline_mode = #tpu.pipeline_mode<synchronous>, transform_indices = @transform_11, window_bounds = array<i64: 1, 256>}, {transform_indices = @transform_12, window_bounds = array<i64: 16, 256>}, {transform_indices = @transform_13, window_bounds = array<i64: 8, 128>}]} {
    %c0 = arith.constant 0 : index
    %c0_0 = arith.constant 0 : index
    %0 = vector.load %arg1[%c0, %c0_0] : memref<16x256xbf16, #tpu.memory_space<vmem>>, vector<16x256xbf16>
    %c0_1 = arith.constant 0 : index
    %c0_2 = arith.constant 0 : index
    %1 = vector.load %arg2[%c0_1, %c0_2] : memref<16x128xbf16, #tpu.memory_space<vmem>>, vector<16x128xbf16>
    %c0_3 = arith.constant 0 : index
    %c0_4 = arith.constant 0 : index
    %2 = vector.load %arg4[%c0_3, %c0_4] : memref<256x128xbf16, #tpu.memory_space<vmem>>, vector<256x128xbf16>
    %cst = arith.constant dense<0.000000e+00> : vector<16x128xf32>
    %3 = tpu.matmul %0, %2, %cst {dimension_numbers = #tpu.dot_dimension_numbers<[1], [0], [0], [1], [0, 0, 1, 1], [], []>} : vector<16x256xbf16>, vector<256x128xbf16>, vector<16x128xf32> -> vector<16x128xf32>
    %c0_5 = arith.constant 0 : index
    %c0_6 = arith.constant 0 : index
    %4 = vector.load %arg5[%c0_5, %c0_6] : memref<1x128xf32, #tpu.memory_space<vmem>>, vector<1x128xf32>
    %5 = vector.broadcast %4 : vector<1x128xf32> to vector<16x128xf32>
    %6 = arith.addf %3, %5 : vector<16x128xf32>
    %cst_7 = arith.constant 0.000000e+00 : f32
    %7 = vector.broadcast %cst_7 : f32 to vector<16x128xf32>
    %8 = arith.maximumf %6, %7 : vector<16x128xf32>
    %9 = arith.truncf %8 : vector<16x128xf32> to vector<16x128xbf16>
    %c0_8 = arith.constant 0 : index
    %c0_9 = arith.constant 0 : index
    %10 = vector.load %arg6[%c0_8, %c0_9] : memref<128x256xbf16, #tpu.memory_space<vmem>>, vector<128x256xbf16>
    %cst_10 = arith.constant dense<0.000000e+00> : vector<16x256xf32>
    %11 = tpu.matmul %9, %10, %cst_10 {dimension_numbers = #tpu.dot_dimension_numbers<[1], [0], [0], [1], [0, 0, 1, 1], [], []>} : vector<16x128xbf16>, vector<128x256xbf16>, vector<16x256xf32> -> vector<16x256xf32>
    %c0_11 = arith.constant 0 : index
    %c0_12 = arith.constant 0 : index
    %12 = vector.load %arg7[%c0_11, %c0_12] : memref<1x256xf32, #tpu.memory_space<vmem>>, vector<1x256xf32>
    %13 = vector.broadcast %12 : vector<1x256xf32> to vector<16x256xf32>
    %14 = arith.addf %11, %13 : vector<16x256xf32>
    %15 = vector.extract_strided_slice %14 {offsets = [0, 0], sizes = [16, 128], strides = [1, 1]} : vector<16x256xf32> to vector<16x128xf32>
    %16 = vector.extract_strided_slice %14 {offsets = [0, 128], sizes = [16, 128], strides = [1, 1]} : vector<16x256xf32> to vector<16x128xf32>
    %cst_13 = arith.constant 5.000000e-01 : f32
    %17 = vector.broadcast %cst_13 : f32 to vector<16x128xf32>
    %18 = arith.mulf %17, %16 : vector<16x128xf32>
    %19 = math.exp %18 : vector<16x128xf32>
    %c0_14 = arith.constant 0 : index
    %c0_15 = arith.constant 0 : index
    %20 = vector.load %arg3[%c0_14, %c0_15] : memref<16x128xbf16, #tpu.memory_space<vmem>>, vector<16x128xbf16>
    %21 = arith.extf %20 : vector<16x128xbf16> to vector<16x128xf32>
    %22 = arith.mulf %19, %21 : vector<16x128xf32>
    %23 = arith.addf %15, %22 : vector<16x128xf32>
    %24 = arith.truncf %23 : vector<16x128xf32> to vector<16x128xbf16>
    %c0_16 = arith.constant 0 : index
    %c0_17 = arith.constant 0 : index
    %25 = vector.load %arg8[%c0_16, %c0_17] : memref<128x128xbf16, #tpu.memory_space<vmem>>, vector<128x128xbf16>
    %cst_18 = arith.constant dense<0.000000e+00> : vector<16x128xf32>
    %26 = tpu.matmul %24, %25, %cst_18 {dimension_numbers = #tpu.dot_dimension_numbers<[1], [0], [0], [1], [0, 0, 1, 1], [], []>} : vector<16x128xbf16>, vector<128x128xbf16>, vector<16x128xf32> -> vector<16x128xf32>
    %c0_19 = arith.constant 0 : index
    %c0_20 = arith.constant 0 : index
    %27 = vector.load %arg9[%c0_19, %c0_20] : memref<128x128xbf16, #tpu.memory_space<vmem>>, vector<128x128xbf16>
    %cst_21 = arith.constant dense<0.000000e+00> : vector<16x128xf32>
    %28 = tpu.matmul %1, %27, %cst_21 {dimension_numbers = #tpu.dot_dimension_numbers<[1], [0], [0], [1], [0, 0, 1, 1], [], []>} : vector<16x128xbf16>, vector<128x128xbf16>, vector<16x128xf32> -> vector<16x128xf32>
    %29 = arith.addf %26, %28 : vector<16x128xf32>
    %c0_22 = arith.constant 0 : index
    %c0_23 = arith.constant 0 : index
    %30 = vector.load %arg10[%c0_22, %c0_23] : memref<1x128xf32, #tpu.memory_space<vmem>>, vector<1x128xf32>
    %31 = vector.broadcast %30 : vector<1x128xf32> to vector<16x128xf32>
    %32 = arith.addf %29, %31 : vector<16x128xf32>
    %cst_24 = arith.constant 0.000000e+00 : f32
    %33 = vector.broadcast %cst_24 : f32 to vector<16x128xf32>
    %34 = arith.maximumf %32, %33 : vector<16x128xf32>
    %35 = arith.truncf %34 : vector<16x128xf32> to vector<16x128xbf16>
    %c0_25 = arith.constant 0 : index
    %c0_26 = arith.constant 0 : index
    %36 = vector.load %arg11[%c0_25, %c0_26] : memref<128x256xbf16, #tpu.memory_space<vmem>>, vector<128x256xbf16>
    %cst_27 = arith.constant dense<0.000000e+00> : vector<16x256xf32>
    %37 = tpu.matmul %35, %36, %cst_27 {dimension_numbers = #tpu.dot_dimension_numbers<[1], [0], [0], [1], [0, 0, 1, 1], [], []>} : vector<16x128xbf16>, vector<128x256xbf16>, vector<16x256xf32> -> vector<16x256xf32>
    %c0_28 = arith.constant 0 : index
    %c0_29 = arith.constant 0 : index
    %38 = vector.load %arg12[%c0_28, %c0_29] : memref<1x256xf32, #tpu.memory_space<vmem>>, vector<1x256xf32>
    %39 = vector.broadcast %38 : vector<1x256xf32> to vector<16x256xf32>
    %40 = arith.addf %37, %39 : vector<16x256xf32>
    %c0_30 = arith.constant 0 : index
    %c0_31 = arith.constant 0 : index
    %41 = vector.load %arg13[%c0_30, %c0_31] : memref<16x256xf32, #tpu.memory_space<vmem>>, vector<16x256xf32>
    tpu.vector_store %arg13[%c0_30, %c0_31], %40 {strides = array<i32>} : memref<16x256xf32, #tpu.memory_space<vmem>>, vector<16x256xf32>,
    %42 = tpu.iota {dimensions = array<i32: 0>} : vector<16x128xi32>
    %c16_i32 = arith.constant 16 : i32
    %43 = arith.muli %arg0, %c16_i32 : i32
    %44 = vector.broadcast %43 : i32 to vector<16x128xi32>
    %45 = arith.addi %42, %44 : vector<16x128xi32>
    %c16_i32_32 = arith.constant 16 : i32
    %46 = vector.broadcast %c16_i32_32 : i32 to vector<16x128xi32>
    %47 = arith.cmpi slt, %45, %46 : vector<16x128xi32>
    %48 = arith.extui %47 : vector<16x128xi1> to vector<16x128xi32>
    %49 = arith.sitofp %48 : vector<16x128xi32> to vector<16x128xf32>
    %cst_33 = arith.constant 1.000000e+00 : f32
    %50 = vector.broadcast %cst_33 : f32 to vector<16x128xf32>
    %51 = arith.addf %50, %16 : vector<16x128xf32>
    %52 = arith.mulf %15, %15 : vector<16x128xf32>
    %53 = arith.subf %51, %52 : vector<16x128xf32>
    %54 = arith.mulf %19, %19 : vector<16x128xf32>
    %55 = arith.subf %53, %54 : vector<16x128xf32>
    %56 = arith.mulf %55, %49 : vector<16x128xf32>
    %cst_34 = arith.constant 0.000000e+00 : f32
    %57 = vector.broadcast %cst_34 : f32 to vector<8x128xf32>
    %58 = vector.extract_strided_slice %56 {offsets = [0, 0], sizes = [8, 128], strides = [1, 1]} : vector<16x128xf32> to vector<8x128xf32>
    %59 = arith.addf %57, %58 : vector<8x128xf32>
    %60 = vector.extract_strided_slice %56 {offsets = [8, 0], sizes = [8, 128], strides = [1, 1]} : vector<16x128xf32> to vector<8x128xf32>
    %61 = arith.addf %59, %60 : vector<8x128xf32>
    %c0_35 = arith.constant 0 : index
    %c0_36 = arith.constant 0 : index
    %62 = vector.load %arg14[%c0_35, %c0_36] : memref<8x128xf32, #tpu.memory_space<vmem>>, vector<8x128xf32>
    tpu.vector_store %arg14[%c0_35, %c0_36], %61 {strides = array<i32>} : memref<8x128xf32, #tpu.memory_space<vmem>>, vector<8x128xf32>,
    return
  }
  func.func @transform_0(%arg0: i32) -> (i32, i32) {
    %c0_i32 = arith.constant 0 : i32
    %c0_i32_0 = arith.constant 0 : i32
    return %arg0, %c0_i32 : i32, i32
  }
  func.func @transform_1(%arg0: i32) -> (i32, i32) {
    %c0_i32 = arith.constant 0 : i32
    %c0_i32_0 = arith.constant 0 : i32
    return %arg0, %c0_i32 : i32, i32
  }
  func.func @transform_2(%arg0: i32) -> (i32, i32) {
    %c0_i32 = arith.constant 0 : i32
    %c0_i32_0 = arith.constant 0 : i32
    return %arg0, %c0_i32 : i32, i32
  }
  func.func @transform_3(%arg0: i32) -> (i32, i32) {
    %c0_i32 = arith.constant 0 : i32
    %c0_i32_0 = arith.constant 0 : i32
    %c0_i32_1 = arith.constant 0 : i32
    return %c0_i32, %c0_i32_0 : i32, i32
  }
  func.func @transform_4(%arg0: i32) -> (i32, i32) {
    %c0_i32 = arith.constant 0 : i32
    %c0_i32_0 = arith.constant 0 : i32
    %c0_i32_1 = arith.constant 0 : i32
    return %c0_i32, %c0_i32_0 : i32, i32
  }
  func.func @transform_5(%arg0: i32) -> (i32, i32) {
    %c0_i32 = arith.constant 0 : i32
    %c0_i32_0 = arith.constant 0 : i32
    %c0_i32_1 = arith.constant 0 : i32
    return %c0_i32, %c0_i32_0 : i32, i32
  }
  func.func @transform_6(%arg0: i32) -> (i32, i32) {
    %c0_i32 = arith.constant 0 : i32
    %c0_i32_0 = arith.constant 0 : i32
    %c0_i32_1 = arith.constant 0 : i32
    return %c0_i32, %c0_i32_0 : i32, i32
  }
  func.func @transform_7(%arg0: i32) -> (i32, i32) {
    %c0_i32 = arith.constant 0 : i32
    %c0_i32_0 = arith.constant 0 : i32
    %c0_i32_1 = arith.constant 0 : i32
    return %c0_i32, %c0_i32_0 : i32, i32
  }
  func.func @transform_8(%arg0: i32) -> (i32, i32) {
    %c0_i32 = arith.constant 0 : i32
    %c0_i32_0 = arith.constant 0 : i32
    %c0_i32_1 = arith.constant 0 : i32
    return %c0_i32, %c0_i32_0 : i32, i32
  }
  func.func @transform_9(%arg0: i32) -> (i32, i32) {
    %c0_i32 = arith.constant 0 : i32
    %c0_i32_0 = arith.constant 0 : i32
    %c0_i32_1 = arith.constant 0 : i32
    return %c0_i32, %c0_i32_0 : i32, i32
  }
  func.func @transform_10(%arg0: i32) -> (i32, i32) {
    %c0_i32 = arith.constant 0 : i32
    %c0_i32_0 = arith.constant 0 : i32
    %c0_i32_1 = arith.constant 0 : i32
    return %c0_i32, %c0_i32_0 : i32, i32
  }
  func.func @transform_11(%arg0: i32) -> (i32, i32) {
    %c0_i32 = arith.constant 0 : i32
    %c0_i32_0 = arith.constant 0 : i32
    %c0_i32_1 = arith.constant 0 : i32
    return %c0_i32, %c0_i32_0 : i32, i32
  }
  func.func @transform_12(%arg0: i32) -> (i32, i32) {
    %c0_i32 = arith.constant 0 : i32
    %c0_i32_0 = arith.constant 0 : i32
    return %arg0, %c0_i32 : i32, i32
  }
  func.func @transform_13(%arg0: i32) -> (i32, i32) {
    %c0_i32 = arith.constant 0 : i32
    %c0_i32_0 = arith.constant 0 : i32
    return %arg0, %c0_i32 : i32, i32
  }
}

</mosaic_0001>

<llo_original>
// kernel: tpu_custom_call.1
$region0: #{tpu_custom_call.1}
  #allocation0 [shape = 'u32[]', space=smem, size = 0x4, offset = 0x4, fixed_abs, tag = 'smem constant byte address 0x4 - core index']
  #allocation1 [shape = 'u32[144,128]{1,0:T(1,128)}', space=vmem, size = 0x12000, scoped, tag = 'internal scratch']
  %s0 = inlined_call_operand.hbm [shape: bf16[16,256], index: 0, kind: input, shape index: {}]
  %s1 = inlined_call_operand.hbm [shape: bf16[16,128], index: 1, kind: input, shape index: {}]
  %s2 = inlined_call_operand.hbm [shape: bf16[16,128], index: 2, kind: input, shape index: {}]
  %s3 = inlined_call_operand.hbm [shape: bf16[256,128], index: 3, kind: input, shape index: {}]
  %s4 = inlined_call_operand.vmem [shape: f32[1,128], index: 4, kind: input, shape index: {}]
  %s5 = inlined_call_operand.hbm [shape: bf16[128,256], index: 5, kind: input, shape index: {}]
  %s6 = inlined_call_operand.vmem [shape: f32[1,256], index: 6, kind: input, shape index: {}]
  %s7 = inlined_call_operand.hbm [shape: bf16[128,128], index: 7, kind: input, shape index: {}]
  %s8 = inlined_call_operand.hbm [shape: bf16[128,128], index: 8, kind: input, shape index: {}]
  %s9 = inlined_call_operand.vmem [shape: f32[1,128], index: 9, kind: input, shape index: {}]
  %s10 = inlined_call_operand.hbm [shape: bf16[128,256], index: 10, kind: input, shape index: {}]
  %s11 = inlined_call_operand.vmem [shape: f32[1,256], index: 11, kind: input, shape index: {}]
  %s12 = inlined_call_operand.hbm [shape: f32[16,256], index: 12, kind: output, shape index: {0}]
  %s13 = inlined_call_operand.hbm [shape: f32[8,128], index: 13, kind: output, shape index: {1}]
  %14 = xla_tuple %s12, %s13
  %s15 = sld [smem:[#allocation0]]
  $region98: #{tpu_custom_call.1} parent=0
    _
  %s17 = ssub.s32 1, %s15
  %s18 = scalar_select 0, %s17, %s15
  $region1: #{tpu_custom_call.1} parent=0
    #allocation2 [shape = 'u8[8192]{0}', space=vmem, size = 0x2000, scoped, tag = 'input window, operand 0, single buffered']
    #allocation3 [shape = 's32[1]{0}', space=sflag, size = 0x4, scoped, tag = 'scoped memory for tpu_custom_call.1']
    #allocation4 [shape = 's32[1]{0}', space=sflag, size = 0x4, scoped, tag = 'scoped memory for tpu_custom_call.1']
    #allocation5 [shape = 'u8[4096]{0}', space=vmem, size = 0x1000, scoped, tag = 'input window, operand 1, single buffered']
    #allocation6 [shape = 's32[1]{0}', space=sflag, size = 0x4, scoped, tag = 'scoped memory for tpu_custom_call.1']
    #allocation7 [shape = 'u8[4096]{0}', space=vmem, size = 0x1000, scoped, tag = 'input window, operand 2, single buffered']
    #allocation8 [shape = 'u8[65536]{0}', space=vmem, size = 0x10000, scoped, tag = 'input window, operand 3, single buffered']
    #allocation9 [shape = 's32[1]{0}', space=sflag, size = 0x4, scoped, tag = 'scoped memory for tpu_custom_call.1']
    #allocation10 [shape = 'u8[65536]{0}', space=vmem, size = 0x10000, scoped, tag = 'input window, operand 5, single buffered']
    #allocation11 [shape = 'u8[32768]{0}', space=vmem, size = 0x8000, scoped, tag = 'input window, operand 7, single buffered']
    #allocation12 [shape = 's32[1]{0}', space=sflag, size = 0x4, scoped, tag = 'scoped memory for tpu_custom_call.1']
    #allocation13 [shape = 'u8[32768]{0}', space=vmem, size = 0x8000, scoped, tag = 'input window, operand 8, single buffered']
    #allocation14 [shape = 'u8[65536]{0}', space=vmem, size = 0x10000, scoped, tag = 'input window, operand 10, single buffered']
    #allocation15 [shape = 's32[1]{0}', space=sflag, size = 0x4, scoped, tag = 'scoped memory for tpu_custom_call.1']
    #allocation16 [shape = 'u8[16384]{0}', space=vmem, size = 0x4000, scoped, tag = 'output window, operand 0, single buffered']
    #allocation17 [shape = 'u8[4096]{0}', space=vmem, size = 0x1000, scoped, tag = 'output window, operand 1, single buffered']
    #allocation18 [shape = 's32[1]{0}', space=sflag, size = 0x4, scoped, tag = 'scoped memory for tpu_custom_call.1']
    %19 = vsyncpa [#allocation3], 0
    %20 = vsyncpa [#allocation6], 0
    %21 = vsyncpa [#allocation9], 0
    %22 = vsyncpa [#allocation12], 0
    %23 = vsyncpa [#allocation15], 0
    %24 = vsyncpa [#allocation4], 0
    %25 = vsyncpa [#allocation18], 0
    // Predicated region
    $region2: #{tpu_custom_call.1} parent=1 // pred_check
      _
    $region3: #{tpu_custom_call.1} parent=1 // pred_check_branch
      %27 = sbr.rel (0) target = $region5
    $region4: #{tpu_custom_call.1} parent=1 // pred_region
      %s29 = ssub.s32 256, 256
      %30 = vsyncadd [#allocation3], %s29
      %s31 = sshll.u32 [#allocation2], 4
      %s32 = int_to_ptr.vmem [resolvable:$true] %s31
      %37 = dma.hbm_to_vmem [thread:$0]  %s0, 256, %s32, [#allocation3], 128, 128, 8
    $region5: #{tpu_custom_call.1} parent=1 // pred_fallthru
      _
    // Predicated region
    $region6: #{tpu_custom_call.1} parent=1 // pred_check
      _
    $region7: #{tpu_custom_call.1} parent=1 // pred_check_branch
      %39 = sbr.rel (0) target = $region9
    $region8: #{tpu_custom_call.1} parent=1 // pred_region
      %s41 = ssub.s32 128, 128
      %42 = vsyncadd [#allocation6], %s41
      %s43 = sshll.u32 [#allocation5], 4
      %s44 = int_to_ptr.vmem [resolvable:$true] %s43
      %49 = dma.hbm_to_vmem [thread:$0]  %s1, 128, %s44, [#allocation6], 64, 64, 4
    $region9: #{tpu_custom_call.1} parent=1 // pred_fallthru
      _
    // Predicated region
    $region10: #{tpu_custom_call.1} parent=1 // pred_check
      _
    $region11: #{tpu_custom_call.1} parent=1 // pred_check_branch
      %51 = sbr.rel (0) target = $region13
    $region12: #{tpu_custom_call.1} parent=1 // pred_region
      %s53 = ssub.s32 128, 128
      %54 = vsyncadd [#allocation6], %s53
      %s55 = sshll.u32 [#allocation7], 4
      %s56 = int_to_ptr.vmem [resolvable:$true] %s55
      %61 = dma.hbm_to_vmem [thread:$0]  %s2, 128, %s56, [#allocation6], 64, 64, 4
    $region13: #{tpu_custom_call.1} parent=1 // pred_fallthru
      _
    // Predicated region
    $region14: #{tpu_custom_call.1} parent=1 // pred_check
      _
    $region15: #{tpu_custom_call.1} parent=1 // pred_check_branch
      %63 = sbr.rel (0) target = $region17
    $region16: #{tpu_custom_call.1} parent=1 // pred_region
      %s65 = ssub.s32 2048, 2048
      %66 = vsyncadd [#allocation9], %s65
      %s67 = sshll.u32 [#allocation8], 4
      %s68 = int_to_ptr.vmem [resolvable:$true] %s67
      %73 = dma.hbm_to_vmem [thread:$0]  %s3, 2048, %s68, [#allocation9], 64, 64, 4
    $region17: #{tpu_custom_call.1} parent=1 // pred_fallthru
      _
    // Predicated region
    $region18: #{tpu_custom_call.1} parent=1 // pred_check
      _
    $region19: #{tpu_custom_call.1} parent=1 // pred_check_branch
      %75 = sbr.rel (0) target = $region21
    $region20: #{tpu_custom_call.1} parent=1 // pred_region
      _
    $region21: #{tpu_custom_call.1} parent=1 // pred_fallthru
      _
    // Predicated region
    $region22: #{tpu_custom_call.1} parent=1 // pred_check
      _
    $region23: #{tpu_custom_call.1} parent=1 // pred_check_branch
      %77 = sbr.rel (0) target = $region25
    $region24: #{tpu_custom_call.1} parent=1 // pred_region
      %s79 = ssub.s32 2048, 2048
      %80 = vsyncadd [#allocation9], %s79
      %s81 = sshll.u32 [#allocation10], 4
      %s82 = int_to_ptr.vmem [resolvable:$true] %s81
      %87 = dma.hbm_to_vmem [thread:$0]  %s5, 2048, %s82, [#allocation9], 128, 128, 8
    $region25: #{tpu_custom_call.1} parent=1 // pred_fallthru
      _
    // Predicated region
    $region26: #{tpu_custom_call.1} parent=1 // pred_check
      _
    $region27: #{tpu_custom_call.1} parent=1 // pred_check_branch
      %89 = sbr.rel (0) target = $region29
    $region28: #{tpu_custom_call.1} parent=1 // pred_region
      _
    $region29: #{tpu_custom_call.1} parent=1 // pred_fallthru
      _
    // Predicated region
    $region30: #{tpu_custom_call.1} parent=1 // pred_check
      _
    $region31: #{tpu_custom_call.1} parent=1 // pred_check_branch
      %91 = sbr.rel (0) target = $region33
    $region32: #{tpu_custom_call.1} parent=1 // pred_region
      %s93 = ssub.s32 1024, 1024
      %94 = vsyncadd [#allocation12], %s93
      %s95 = sshll.u32 [#allocation11], 4
      %s96 = int_to_ptr.vmem [resolvable:$true] %s95
      %101 = dma.hbm_to_vmem [thread:$0]  %s7, 1024, %s96, [#allocation12], 64, 64, 4
    $region33: #{tpu_custom_call.1} parent=1 // pred_fallthru
      _
    // Predicated region
    $region34: #{tpu_custom_call.1} parent=1 // pred_check
      _
    $region35: #{tpu_custom_call.1} parent=1 // pred_check_branch
      %103 = sbr.rel (0) target = $region37
    $region36: #{tpu_custom_call.1} parent=1 // pred_region
      %s105 = ssub.s32 1024, 1024
      %106 = vsyncadd [#allocation12], %s105
      %s107 = sshll.u32 [#allocation13], 4
      %s108 = int_to_ptr.vmem [resolvable:$true] %s107
      %113 = dma.hbm_to_vmem [thread:$0]  %s8, 1024, %s108, [#allocation12], 64, 64, 4
    $region37: #{tpu_custom_call.1} parent=1 // pred_fallthru
      _
    // Predicated region
    $region38: #{tpu_custom_call.1} parent=1 // pred_check
      _
    $region39: #{tpu_custom_call.1} parent=1 // pred_check_branch
      %115 = sbr.rel (0) target = $region41
    $region40: #{tpu_custom_call.1} parent=1 // pred_region
      _
    $region41: #{tpu_custom_call.1} parent=1 // pred_fallthru
      _
    // Predicated region
    $region42: #{tpu_custom_call.1} parent=1 // pred_check
      _
    $region43: #{tpu_custom_call.1} parent=1 // pred_check_branch
      %117 = sbr.rel (0) target = $region45
    $region44: #{tpu_custom_call.1} parent=1 // pred_region
      %s119 = ssub.s32 2048, 2048
      %120 = vsyncadd [#allocation15], %s119
      %s121 = sshll.u32 [#allocation14], 4
      %s122 = int_to_ptr.vmem [resolvable:$true] %s121
      %127 = dma.hbm_to_vmem [thread:$0]  %s10, 2048, %s122, [#allocation15], 128, 128, 8
    $region45: #{tpu_custom_call.1} parent=1 // pred_fallthru
      _
    // Predicated region
    $region46: #{tpu_custom_call.1} parent=1 // pred_check
      _
    $region47: #{tpu_custom_call.1} parent=1 // pred_check_branch
      %129 = sbr.rel (0) target = $region49
    $region48: #{tpu_custom_call.1} parent=1 // pred_region
      _
    $region49: #{tpu_custom_call.1} parent=1 // pred_fallthru
      _
    // Predicated region
    $region50: #{tpu_custom_call.1} parent=1 // pred_check
      _
    $region51: #{tpu_custom_call.1} parent=1 // pred_check_branch
      %131 = sbr.rel (0) target = $region53
    $region52: #{tpu_custom_call.1} parent=1 // pred_region
      %132 = dma.done [#allocation3], 256
    $region53: #{tpu_custom_call.1} parent=1 // pred_fallthru
      _
    // Predicated region
    $region54: #{tpu_custom_call.1} parent=1 // pred_check
      _
    $region55: #{tpu_custom_call.1} parent=1 // pred_check_branch
      %134 = sbr.rel (0) target = $region57
    $region56: #{tpu_custom_call.1} parent=1 // pred_region
      %135 = dma.done [#allocation6], 128
    $region57: #{tpu_custom_call.1} parent=1 // pred_fallthru
      _
    // Predicated region
    $region58: #{tpu_custom_call.1} parent=1 // pred_check
      _
    $region59: #{tpu_custom_call.1} parent=1 // pred_check_branch
      %137 = sbr.rel (0) target = $region61
    $region60: #{tpu_custom_call.1} parent=1 // pred_region
      %138 = dma.done [#allocation6], 128
    $region61: #{tpu_custom_call.1} parent=1 // pred_fallthru
      _
    // Predicated region
    $region62: #{tpu_custom_call.1} parent=1 // pred_check
      _
    $region63: #{tpu_custom_call.1} parent=1 // pred_check_branch
      %140 = sbr.rel (0) target = $region65
    $region64: #{tpu_custom_call.1} parent=1 // pred_region
      %141 = dma.done [#allocation9], 2048
    $region65: #{tpu_custom_call.1} parent=1 // pred_fallthru
      _
    // Predicated region
    $region66: #{tpu_custom_call.1} parent=1 // pred_check
      _
    $region67: #{tpu_custom_call.1} parent=1 // pred_check_branch
      %143 = sbr.rel (0) target = $region69
    $region68: #{tpu_custom_call.1} parent=1 // pred_region
      %144 = dma.done [#allocation9], 2048
    $region69: #{tpu_custom_call.1} parent=1 // pred_fallthru
      _
    // Predicated region
    $region70: #{tpu_custom_call.1} parent=1 // pred_check
      _
    $region71: #{tpu_custom_call.1} parent=1 // pred_check_branch
      %146 = sbr.rel (0) target = $region73
    $region72: #{tpu_custom_call.1} parent=1 // pred_region
      %147 = dma.done [#allocation12], 1024
    $region73: #{tpu_custom_call.1} parent=1 // pred_fallthru
      _
    // Predicated region
    $region74: #{tpu_custom_call.1} parent=1 // pred_check
      _
    $region75: #{tpu_custom_call.1} parent=1 // pred_check_branch
      %149 = sbr.rel (0) target = $region77
    $region76: #{tpu_custom_call.1} parent=1 // pred_region
      %150 = dma.done [#allocation12], 1024
    $region77: #{tpu_custom_call.1} parent=1 // pred_fallthru
      _
    // Predicated region
    $region78: #{tpu_custom_call.1} parent=1 // pred_check
      _
    $region79: #{tpu_custom_call.1} parent=1 // pred_check_branch
      %152 = sbr.rel (0) target = $region81
    $region80: #{tpu_custom_call.1} parent=1 // pred_region
      %153 = dma.done [#allocation15], 2048
    $region81: #{tpu_custom_call.1} parent=1 // pred_fallthru
      _
    %v155 = vld [vmem:[#allocation2] sm:$0xff]
    %v156 = vld [vmem:[#allocation2 + $0x8] sm:$0xff]
    %v157 = vld [vmem:[#allocation5] sm:$0xf]
    %v158 = vld [vmem:[#allocation5 + $0x4] sm:$0xf]
    %v159 = vld [vmem:[#allocation8] sm:$0xf]
    %v160 = vld [vmem:[#allocation8 + $0x4] sm:$0xf]
    %v161 = vld [vmem:[#allocation8 + $0x8] sm:$0xf]
    %v162 = vld [vmem:[#allocation8 + $0xc] sm:$0xf]
    %v163 = vld [vmem:[#allocation8 + $0x10] sm:$0xf]
    %v164 = vld [vmem:[#allocation8 + $0x14] sm:$0xf]
    %v165 = vld [vmem:[#allocation8 + $0x18] sm:$0xf]
    %v166 = vld [vmem:[#allocation8 + $0x1c] sm:$0xf]
    %v167 = vld [vmem:[#allocation8 + $0x20] sm:$0xf]
    %v168 = vld [vmem:[#allocation8 + $0x24] sm:$0xf]
    %v169 = vld [vmem:[#allocation8 + $0x28] sm:$0xf]
    %v170 = vld [vmem:[#allocation8 + $0x2c] sm:$0xf]
    %v171 = vld [vmem:[#allocation8 + $0x30] sm:$0xf]
    %v172 = vld [vmem:[#allocation8 + $0x34] sm:$0xf]
    %v173 = vld [vmem:[#allocation8 + $0x38] sm:$0xf]
    %v174 = vld [vmem:[#allocation8 + $0x3c] sm:$0xf]
    %v175 = vld [vmem:[#allocation8 + $0x40] sm:$0xf]
    %v176 = vld [vmem:[#allocation8 + $0x44] sm:$0xf]
    %v177 = vld [vmem:[#allocation8 + $0x48] sm:$0xf]
    %v178 = vld [vmem:[#allocation8 + $0x4c] sm:$0xf]
    %v179 = vld [vmem:[#allocation8 + $0x50] sm:$0xf]
    %v180 = vld [vmem:[#allocation8 + $0x54] sm:$0xf]
    %v181 = vld [vmem:[#allocation8 + $0x58] sm:$0xf]
    %v182 = vld [vmem:[#allocation8 + $0x5c] sm:$0xf]
    %v183 = vld [vmem:[#allocation8 + $0x60] sm:$0xf]
    %v184 = vld [vmem:[#allocation8 + $0x64] sm:$0xf]
    %v185 = vld [vmem:[#allocation8 + $0x68] sm:$0xf]
    %v186 = vld [vmem:[#allocation8 + $0x6c] sm:$0xf]
    %v187 = vld [vmem:[#allocation8 + $0x70] sm:$0xf]
    %v188 = vld [vmem:[#allocation8 + $0x74] sm:$0xf]
    %v189 = vld [vmem:[#allocation8 + $0x78] sm:$0xf]
    %v190 = vld [vmem:[#allocation8 + $0x7c] sm:$0xf]
    %v191 = vld [vmem:[%s4] sm:$0x1]
    %v193 = vlaneseq
    %v194 = vshrl.u32 %v193, 7
    %v195 = vsub.s32 0, %v194
    %v196 = vrot.slane %v191, %v195
    %v200 = vunpack.c.l.b16 %v155
    %v201 = vunpack.c.h.b16 %v155
    %v202 = vunpack.c.l.b16 %v156
    %v203 = vunpack.c.h.b16 %v156
    %v204 = vpack.c.b16 %v202, %v200
    %v205 = vpack.c.b16 %v203, %v201
    %v240 = vunpack.c.l.b16 %v159
    %v241 = vunpack.c.l.b16 %v160
    %v242 = vunpack.c.l.b16 %v161
    %v243 = vunpack.c.l.b16 %v162
    %v244 = vunpack.c.l.b16 %v163
    %v245 = vunpack.c.l.b16 %v164
    %v246 = vunpack.c.l.b16 %v165
    %v247 = vunpack.c.l.b16 %v166
    %v248 = vunpack.c.l.b16 %v167
    %v249 = vunpack.c.l.b16 %v168
    %v250 = vunpack.c.l.b16 %v169
    %v251 = vunpack.c.l.b16 %v170
    %v252 = vunpack.c.l.b16 %v171
    %v253 = vunpack.c.l.b16 %v172
    %v254 = vunpack.c.l.b16 %v173
    %v255 = vunpack.c.l.b16 %v174
    %v256 = vunpack.c.l.b16 %v175
    %v257 = vunpack.c.l.b16 %v176
    %v258 = vunpack.c.l.b16 %v177
    %v259 = vunpack.c.l.b16 %v178
    %v260 = vunpack.c.l.b16 %v179
    %v261 = vunpack.c.l.b16 %v180
    %v262 = vunpack.c.l.b16 %v181
    %v263 = vunpack.c.l.b16 %v182
    %v264 = vunpack.c.l.b16 %v183
    %v265 = vunpack.c.l.b16 %v184
    %v266 = vunpack.c.l.b16 %v185
    %v267 = vunpack.c.l.b16 %v186
    %v268 = vunpack.c.l.b16 %v187
    %v269 = vunpack.c.l.b16 %v188
    %v270 = vunpack.c.l.b16 %v189
    %v271 = vunpack.c.l.b16 %v190
    %v272 = vpack.c.b16 %v241, %v240
    %v273 = vpack.c.b16 %v243, %v242
    %v274 = vpack.c.b16 %v245, %v244
    %v275 = vpack.c.b16 %v247, %v246
    %v276 = vpack.c.b16 %v249, %v248
    %v277 = vpack.c.b16 %v251, %v250
    %v278 = vpack.c.b16 %v253, %v252
    %v279 = vpack.c.b16 %v255, %v254
    %v280 = vpack.c.b16 %v257, %v256
    %v281 = vpack.c.b16 %v259, %v258
    %v282 = vpack.c.b16 %v261, %v260
    %v283 = vpack.c.b16 %v263, %v262
    %v284 = vpack.c.b16 %v265, %v264
    %v285 = vpack.c.b16 %v267, %v266
    %v286 = vpack.c.b16 %v269, %v268
    %v287 = vpack.c.b16 %v271, %v270
    %304 = vmatprep.subr.bf16.mxu0 0
    %305 = vmatpush1.bf16.msra.mxu0 %v272
    %306 = vmatprep.subr.bf16.mxu0 0
    %307 = vmatpush1.bf16.msra.mxu0 %v273
    %308 = vmatprep.subr.bf16.mxu0 0
    %309 = vmatpush1.bf16.msra.mxu0 %v274
    %310 = vmatprep.subr.bf16.mxu0 0
    %311 = vmatpush1.bf16.msra.mxu0 %v275
    %312 = vmatprep.subr.bf16.mxu0 0
    %313 = vmatpush1.bf16.msra.mxu0 %v276
    %314 = vmatprep.subr.bf16.mxu0 0
    %315 = vmatpush1.bf16.msra.mxu0 %v277
    %316 = vmatprep.subr.bf16.mxu0 0
    %317 = vmatpush1.bf16.msra.mxu0 %v278
    %318 = vmatprep.subr.bf16.mxu0 0
    %319 = vmatpush1.bf16.msra.mxu0 %v279
    %320 = vmatprep.subr.bf16.mxu0 0
    %321 = vmatpush1.bf16.msra.mxu0 %v280
    %322 = vmatprep.subr.bf16.mxu0 0
    %323 = vmatpush1.bf16.msra.mxu0 %v281
    %324 = vmatprep.subr.bf16.mxu0 0
    %325 = vmatpush1.bf16.msra.mxu0 %v282
    %326 = vmatprep.subr.bf16.mxu0 0
    %327 = vmatpush1.bf16.msra.mxu0 %v283
    %328 = vmatprep.subr.bf16.mxu0 0
    %329 = vmatpush1.bf16.msra.mxu0 %v284
    %330 = vmatprep.subr.bf16.mxu0 0
    %331 = vmatpush1.bf16.msra.mxu0 %v285
    %332 = vmatprep.subr.bf16.mxu0 0
    %333 = vmatpush1.bf16.msra.mxu0 %v286
    %334 = vmatprep.subr.bf16.mxu0 0
    %335 = vmatpush1.bf16.msra.mxu0 %v287
    %336 = vmatprep.mubr.bf16.mxu0 %v205
    %337 = vmatmul.mubr.bf16.gmra.mrb[0].mxu0 %v204
    %v338 = vpop.f32.mrb[0].mxu0
    %v339 = vadd.f32 %v196, %v338
    %v340 = vpop.f32.mrb[0].mxu0
    %v341 = vpop.f32.mrb[0].mxu0
    %v342 = vadd.f32 %v196, %v341
    %v343 = vpop.f32.mrb[0].mxu0
    %344 = vdwg.mxu0
    %v345 = vmax.f32 %v339, 0.0
    %v346 = vmax.f32 %v342, 0.0
    %v347 = vpack.c.bf16 %v346, %v345
    %v348 = vld [vmem:[#allocation10] sm:$0xff]
    %v349 = vld [vmem:[#allocation10 + $0x8] sm:$0xff]
    %v350 = vld [vmem:[#allocation10 + $0x10] sm:$0xff]
    %v351 = vld [vmem:[#allocation10 + $0x18] sm:$0xff]
    %v352 = vld [vmem:[#allocation10 + $0x20] sm:$0xff]
    %v353 = vld [vmem:[#allocation10 + $0x28] sm:$0xff]
    %v354 = vld [vmem:[#allocation10 + $0x30] sm:$0xff]
    %v355 = vld [vmem:[#allocation10 + $0x38] sm:$0xff]
    %v356 = vld [vmem:[#allocation10 + $0x40] sm:$0xff]
    %v357 = vld [vmem:[#allocation10 + $0x48] sm:$0xff]
    %v358 = vld [vmem:[#allocation10 + $0x50] sm:$0xff]
    %v359 = vld [vmem:[#allocation10 + $0x58] sm:$0xff]
    %v360 = vld [vmem:[#allocation10 + $0x60] sm:$0xff]
    %v361 = vld [vmem:[#allocation10 + $0x68] sm:$0xff]
    %v362 = vld [vmem:[#allocation10 + $0x70] sm:$0xff]
    %v363 = vld [vmem:[#allocation10 + $0x78] sm:$0xff]
    %v364 = vld [vmem:[%s6] sm:$0x3]
    %v366 = vlaneseq
    %v367 = vshrl.u32 %v366, 7
    %v368 = vsub.s32 0, %v367
    %v369 = vrot.slane %v364, %v368
    %v370 = vlaneseq
    %v371 = vshrl.u32 %v370, 7
    %v372 = vsub.s32 1, %v371
    %v373 = vrot.slane %v364, %v372
    %v392 = vunpack.c.l.b16 %v348
    %v393 = vunpack.c.h.b16 %v348
    %v394 = vunpack.c.l.b16 %v349
    %v395 = vunpack.c.h.b16 %v349
    %v396 = vunpack.c.l.b16 %v350
    %v397 = vunpack.c.h.b16 %v350
    %v398 = vunpack.c.l.b16 %v351
    %v399 = vunpack.c.h.b16 %v351
    %v400 = vunpack.c.l.b16 %v352
    %v401 = vunpack.c.h.b16 %v352
    %v402 = vunpack.c.l.b16 %v353
    %v403 = vunpack.c.h.b16 %v353
    %v404 = vunpack.c.l.b16 %v354
    %v405 = vunpack.c.h.b16 %v354
    %v406 = vunpack.c.l.b16 %v355
    %v407 = vunpack.c.h.b16 %v355
    %v408 = vunpack.c.l.b16 %v356
    %v409 = vunpack.c.h.b16 %v356
    %v410 = vunpack.c.l.b16 %v357
    %v411 = vunpack.c.h.b16 %v357
    %v412 = vunpack.c.l.b16 %v358
    %v413 = vunpack.c.h.b16 %v358
    %v414 = vunpack.c.l.b16 %v359
    %v415 = vunpack.c.h.b16 %v359
    %v416 = vunpack.c.l.b16 %v360
    %v417 = vunpack.c.h.b16 %v360
    %v418 = vunpack.c.l.b16 %v361
    %v419 = vunpack.c.h.b16 %v361
    %v420 = vunpack.c.l.b16 %v362
    %v421 = vunpack.c.h.b16 %v362
    %v422 = vunpack.c.l.b16 %v363
    %v423 = vunpack.c.h.b16 %v363
    %v424 = vpack.c.b16 %v394, %v392
    %v425 = vpack.c.b16 %v395, %v393
    %v426 = vpack.c.b16 %v398, %v396
    %v427 = vpack.c.b16 %v399, %v397
    %v428 = vpack.c.b16 %v402, %v400
    %v429 = vpack.c.b16 %v403, %v401
    %v430 = vpack.c.b16 %v406, %v404
    %v431 = vpack.c.b16 %v407, %v405
    %v432 = vpack.c.b16 %v410, %v408
    %v433 = vpack.c.b16 %v411, %v409
    %v434 = vpack.c.b16 %v414, %v412
    %v435 = vpack.c.b16 %v415, %v413
    %v436 = vpack.c.b16 %v418, %v416
    %v437 = vpack.c.b16 %v419, %v417
    %v438 = vpack.c.b16 %v422, %v420
    %v439 = vpack.c.b16 %v423, %v421
    %456 = vmatprep.subr.bf16.mxu0 %v425
    %457 = vmatpush1.bf16.msra.mxu0 %v424
    %458 = vmatprep.subr.bf16.mxu0 %v427
    %459 = vmatpush1.bf16.msra.mxu0 %v426
    %460 = vmatprep.subr.bf16.mxu0 %v429
    %461 = vmatpush1.bf16.msra.mxu0 %v428
    %462 = vmatprep.subr.bf16.mxu0 %v431
    %463 = vmatpush1.bf16.msra.mxu0 %v430
    %464 = vmatprep.subr.bf16.mxu0 %v433
    %465 = vmatpush1.bf16.msra.mxu0 %v432
    %466 = vmatprep.subr.bf16.mxu0 %v435
    %467 = vmatpush1.bf16.msra.mxu0 %v434
    %468 = vmatprep.subr.bf16.mxu0 %v437
    %469 = vmatpush1.bf16.msra.mxu0 %v436
    %470 = vmatprep.subr.bf16.mxu0 %v439
    %471 = vmatpush1.bf16.msra.mxu0 %v438
    %472 = vmatprep.subr.bf16.mxu0 0
    %473 = vmatpush1.bf16.msra.mxu0 0
    %474 = vmatprep.subr.bf16.mxu0 0
    %475 = vmatpush1.bf16.msra.mxu0 0
    %476 = vmatprep.subr.bf16.mxu0 0
    %477 = vmatpush1.bf16.msra.mxu0 0
    %478 = vmatprep.subr.bf16.mxu0 0
    %479 = vmatpush1.bf16.msra.mxu0 0
    %480 = vmatprep.subr.bf16.mxu0 0
    %481 = vmatpush1.bf16.msra.mxu0 0
    %482 = vmatprep.subr.bf16.mxu0 0
    %483 = vmatpush1.bf16.msra.mxu0 0
    %484 = vmatprep.subr.bf16.mxu0 0
    %485 = vmatpush1.bf16.msra.mxu0 0
    %486 = vmatprep.subr.bf16.mxu0 0
    %487 = vmatpush1.bf16.msra.mxu0 0
    %488 = vmatprep.mubr.bf16.mxu0 0
    %489 = vmatmul.mubr.bf16.gmra.mrb[0].mxu0 %v347
    %v490 = vpop.f32.mrb[0].mxu0
    %v491 = vadd.f32 %v369, %v490
    %v492 = vpop.f32.mrb[0].mxu0
    %v493 = vadd.f32 %v373, %v492
    %v494 = vpop.f32.mrb[0].mxu0
    %v495 = vadd.f32 %v369, %v494
    %v496 = vpop.f32.mrb[0].mxu0
    %v497 = vadd.f32 %v373, %v496
    %498 = vdwg.mxu0
    %v499 = vmul.f32 %v493, 0.5
    %v500 = vmul.f32 %v497, 0.5
    %v501 = vmul.f32 %v499, 1.442695
    %v502 = vpow.pop %v501
    %v503 = vmul.f32 %v500, 1.442695
    %v504 = vpow.pop %v503
    %v505 = vld [vmem:[#allocation7] sm:$0xf]
    %v506 = vld [vmem:[#allocation7 + $0x4] sm:$0xf]
    %v507 = vunpack.c.l.bf16 %v505
    %v508 = vunpack.c.l.bf16 %v506
    %v509 = vmul.f32 %v502, %v507
    %v510 = vmul.f32 %v504, %v508
    %v511 = vadd.f32 %v491, %v509
    %v512 = vadd.f32 %v495, %v510
    %v513 = vpack.c.bf16 %v512, %v511
    %v514 = vld [vmem:[#allocation11] sm:$0xf]
    %v515 = vld [vmem:[#allocation11 + $0x4] sm:$0xf]
    %v516 = vld [vmem:[#allocation11 + $0x8] sm:$0xf]
    %v517 = vld [vmem:[#allocation11 + $0xc] sm:$0xf]
    %v518 = vld [vmem:[#allocation11 + $0x10] sm:$0xf]
    %v519 = vld [vmem:[#allocation11 + $0x14] sm:$0xf]
    %v520 = vld [vmem:[#allocation11 + $0x18] sm:$0xf]
    %v521 = vld [vmem:[#allocation11 + $0x1c] sm:$0xf]
    %v522 = vld [vmem:[#allocation11 + $0x20] sm:$0xf]
    %v523 = vld [vmem:[#allocation11 + $0x24] sm:$0xf]
    %v524 = vld [vmem:[#allocation11 + $0x28] sm:$0xf]
    %v525 = vld [vmem:[#allocation11 + $0x2c] sm:$0xf]
    %v526 = vld [vmem:[#allocation11 + $0x30] sm:$0xf]
    %v527 = vld [vmem:[#allocation11 + $0x34] sm:$0xf]
    %v528 = vld [vmem:[#allocation11 + $0x38] sm:$0xf]
    %v529 = vld [vmem:[#allocation11 + $0x3c] sm:$0xf]
    %v530 = vld [vmem:[#allocation13] sm:$0xf]
    %v531 = vld [vmem:[#allocation13 + $0x4] sm:$0xf]
    %v532 = vld [vmem:[#allocation13 + $0x8] sm:$0xf]
    %v533 = vld [vmem:[#allocation13 + $0xc] sm:$0xf]
    %v534 = vld [vmem:[#allocation13 + $0x10] sm:$0xf]
    %v535 = vld [vmem:[#allocation13 + $0x14] sm:$0xf]
    %v536 = vld [vmem:[#allocation13 + $0x18] sm:$0xf]
    %v537 = vld [vmem:[#allocation13 + $0x1c] sm:$0xf]
    %v538 = vld [vmem:[#allocation13 + $0x20] sm:$0xf]
    %v539 = vld [vmem:[#allocation13 + $0x24] sm:$0xf]
    %v540 = vld [vmem:[#allocation13 + $0x28] sm:$0xf]
    %v541 = vld [vmem:[#allocation13 + $0x2c] sm:$0xf]
    %v542 = vld [vmem:[#allocation13 + $0x30] sm:$0xf]
    %v543 = vld [vmem:[#allocation13 + $0x34] sm:$0xf]
    %v544 = vld [vmem:[#allocation13 + $0x38] sm:$0xf]
    %v545 = vld [vmem:[#allocation13 + $0x3c] sm:$0xf]
    %v548 = vunpack.c.l.b16 %v157
    %v549 = vunpack.c.l.b16 %v158
    %v550 = vpack.c.b16 %v549, %v548
    %v568 = vunpack.c.l.b16 %v530
    %v569 = vunpack.c.l.b16 %v531
    %v570 = vunpack.c.l.b16 %v532
    %v571 = vunpack.c.l.b16 %v533
    %v572 = vunpack.c.l.b16 %v534
    %v573 = vunpack.c.l.b16 %v535
    %v574 = vunpack.c.l.b16 %v536
    %v575 = vunpack.c.l.b16 %v537
    %v576 = vunpack.c.l.b16 %v538
    %v577 = vunpack.c.l.b16 %v539
    %v578 = vunpack.c.l.b16 %v540
    %v579 = vunpack.c.l.b16 %v541
    %v580 = vunpack.c.l.b16 %v542
    %v581 = vunpack.c.l.b16 %v543
    %v582 = vunpack.c.l.b16 %v544
    %v583 = vunpack.c.l.b16 %v545
    %v584 = vpack.c.b16 %v569, %v568
    %v585 = vpack.c.b16 %v571, %v570
    %v586 = vpack.c.b16 %v573, %v572
    %v587 = vpack.c.b16 %v575, %v574
    %v588 = vpack.c.b16 %v577, %v576
    %v589 = vpack.c.b16 %v579, %v578
    %v590 = vpack.c.b16 %v581, %v580
    %v591 = vpack.c.b16 %v583, %v582
    %600 = vmatprep.subr.bf16.mxu0 0
    %601 = vmatpush1.bf16.msra.mxu0 %v584
    %602 = vmatprep.subr.bf16.mxu0 0
    %603 = vmatpush1.bf16.msra.mxu0 %v585
    %604 = vmatprep.subr.bf16.mxu0 0
    %605 = vmatpush1.bf16.msra.mxu0 %v586
    %606 = vmatprep.subr.bf16.mxu0 0
    %607 = vmatpush1.bf16.msra.mxu0 %v587
    %608 = vmatprep.subr.bf16.mxu0 0
    %609 = vmatpush1.bf16.msra.mxu0 %v588
    %610 = vmatprep.subr.bf16.mxu0 0
    %611 = vmatpush1.bf16.msra.mxu0 %v589
    %612 = vmatprep.subr.bf16.mxu0 0
    %613 = vmatpush1.bf16.msra.mxu0 %v590
    %614 = vmatprep.subr.bf16.mxu0 0
    %615 = vmatpush1.bf16.msra.mxu0 %v591
    %616 = vmatprep.subr.bf16.mxu0 0
    %617 = vmatpush1.bf16.msra.mxu0 0
    %618 = vmatprep.subr.bf16.mxu0 0
    %619 = vmatpush1.bf16.msra.mxu0 0
    %620 = vmatprep.subr.bf16.mxu0 0
    %621 = vmatpush1.bf16.msra.mxu0 0
    %622 = vmatprep.subr.bf16.mxu0 0
    %623 = vmatpush1.bf16.msra.mxu0 0
    %624 = vmatprep.subr.bf16.mxu0 0
    %625 = vmatpush1.bf16.msra.mxu0 0
    %626 = vmatprep.subr.bf16.mxu0 0
    %627 = vmatpush1.bf16.msra.mxu0 0
    %628 = vmatprep.subr.bf16.mxu0 0
    %629 = vmatpush1.bf16.msra.mxu0 0
    %630 = vmatprep.subr.bf16.mxu0 0
    %631 = vmatpush1.bf16.msra.mxu0 0
    %632 = vmatprep.mubr.bf16.mxu0 0
    %633 = vmatmul.mubr.bf16.gmra.mrb[0].mxu0 %v550
    %v634 = vpop.f32.mrb[0].mxu0
    %v635 = vadd.f32 0.0, %v634
    %v636 = vpop.f32.mrb[0].mxu0
    %v637 = vpop.f32.mrb[0].mxu0
    %v638 = vadd.f32 0.0, %v637
    %v639 = vpop.f32.mrb[0].mxu0
    %640 = vdwg.mxu0
    %v657 = vunpack.c.l.b16 %v514
    %v658 = vunpack.c.l.b16 %v515
    %v659 = vunpack.c.l.b16 %v516
    %v660 = vunpack.c.l.b16 %v517
    %v661 = vunpack.c.l.b16 %v518
    %v662 = vunpack.c.l.b16 %v519
    %v663 = vunpack.c.l.b16 %v520
    %v664 = vunpack.c.l.b16 %v521
    %v665 = vunpack.c.l.b16 %v522
    %v666 = vunpack.c.l.b16 %v523
    %v667 = vunpack.c.l.b16 %v524
    %v668 = vunpack.c.l.b16 %v525
    %v669 = vunpack.c.l.b16 %v526
    %v670 = vunpack.c.l.b16 %v527
    %v671 = vunpack.c.l.b16 %v528
    %v672 = vunpack.c.l.b16 %v529
    %v673 = vpack.c.b16 %v658, %v657
    %v674 = vpack.c.b16 %v660, %v659
    %v675 = vpack.c.b16 %v662, %v661
    %v676 = vpack.c.b16 %v664, %v663
    %v677 = vpack.c.b16 %v666, %v665
    %v678 = vpack.c.b16 %v668, %v667
    %v679 = vpack.c.b16 %v670, %v669
    %v680 = vpack.c.b16 %v672, %v671
    %689 = vmatprep.subr.bf16.mxu0 0
    %690 = vmatpush1.bf16.msra.mxu0 %v673
    %691 = vmatprep.subr.bf16.mxu0 0
    %692 = vmatpush1.bf16.msra.mxu0 %v674
    %693 = vmatprep.subr.bf16.mxu0 0
    %694 = vmatpush1.bf16.msra.mxu0 %v675
    %695 = vmatprep.subr.bf16.mxu0 0
    %696 = vmatpush1.bf16.msra.mxu0 %v676
    %697 = vmatprep.subr.bf16.mxu0 0
    %698 = vmatpush1.bf16.msra.mxu0 %v677
    %699 = vmatprep.subr.bf16.mxu0 0
    %700 = vmatpush1.bf16.msra.mxu0 %v678
    %701 = vmatprep.subr.bf16.mxu0 0
    %702 = vmatpush1.bf16.msra.mxu0 %v679
    %703 = vmatprep.subr.bf16.mxu0 0
    %704 = vmatpush1.bf16.msra.mxu0 %v680
    %705 = vmatprep.subr.bf16.mxu0 0
    %706 = vmatpush1.bf16.msra.mxu0 0
    %707 = vmatprep.subr.bf16.mxu0 0
    %708 = vmatpush1.bf16.msra.mxu0 0
    %709 = vmatprep.subr.bf16.mxu0 0
    %710 = vmatpush1.bf16.msra.mxu0 0
    %711 = vmatprep.subr.bf16.mxu0 0
    %712 = vmatpush1.bf16.msra.mxu0 0
    %713 = vmatprep.subr.bf16.mxu0 0
    %714 = vmatpush1.bf16.msra.mxu0 0
    %715 = vmatprep.subr.bf16.mxu0 0
    %716 = vmatpush1.bf16.msra.mxu0 0
    %717 = vmatprep.subr.bf16.mxu0 0
    %718 = vmatpush1.bf16.msra.mxu0 0
    %719 = vmatprep.subr.bf16.mxu0 0
    %720 = vmatpush1.bf16.msra.mxu0 0
    %721 = vmatprep.mubr.bf16.mxu0 0
    %722 = vmatmul.mubr.bf16.gmra.mrb[0].mxu0 %v513
    %v723 = vpop.f32.mrb[0].mxu0
    %v724 = vadd.f32 %v635, %v723
    %v725 = vpop.f32.mrb[0].mxu0
    %v726 = vpop.f32.mrb[0].mxu0
    %v727 = vadd.f32 %v638, %v726
    %v728 = vpop.f32.mrb[0].mxu0
    %729 = vdwg.mxu0
    %v730 = vld [vmem:[%s9] sm:$0x1]
    %v732 = vlaneseq
    %v733 = vshrl.u32 %v732, 7
    %v734 = vsub.s32 0, %v733
    %v735 = vrot.slane %v730, %v734
    %v737 = vadd.f32 %v724, %v735
    %v738 = vadd.f32 %v727, %v735
    %v739 = vmax.f32 %v737, 0.0
    %v740 = vmax.f32 %v738, 0.0
    %v741 = vpack.c.bf16 %v740, %v739
    %v742 = vld [vmem:[#allocation14] sm:$0xff]
    %v743 = vld [vmem:[#allocation14 + $0x8] sm:$0xff]
    %v744 = vld [vmem:[#allocation14 + $0x10] sm:$0xff]
    %v745 = vld [vmem:[#allocation14 + $0x18] sm:$0xff]
    %v746 = vld [vmem:[#allocation14 + $0x20] sm:$0xff]
    %v747 = vld [vmem:[#allocation14 + $0x28] sm:$0xff]
    %v748 = vld [vmem:[#allocation14 + $0x30] sm:$0xff]
    %v749 = vld [vmem:[#allocation14 + $0x38] sm:$0xff]
    %v750 = vld [vmem:[#allocation14 + $0x40] sm:$0xff]
    %v751 = vld [vmem:[#allocation14 + $0x48] sm:$0xff]
    %v752 = vld [vmem:[#allocation14 + $0x50] sm:$0xff]
    %v753 = vld [vmem:[#allocation14 + $0x58] sm:$0xff]
    %v754 = vld [vmem:[#allocation14 + $0x60] sm:$0xff]
    %v755 = vld [vmem:[#allocation14 + $0x68] sm:$0xff]
    %v756 = vld [vmem:[#allocation14 + $0x70] sm:$0xff]
    %v757 = vld [vmem:[#allocation14 + $0x78] sm:$0xff]
    %v758 = vld [vmem:[%s11] sm:$0x3]
    %v760 = vlaneseq
    %v761 = vshrl.u32 %v760, 7
    %v762 = vsub.s32 0, %v761
    %v763 = vrot.slane %v758, %v762
    %v764 = vlaneseq
    %v765 = vshrl.u32 %v764, 7
    %v766 = vsub.s32 1, %v765
    %v767 = vrot.slane %v758, %v766
    %v786 = vunpack.c.l.b16 %v742
    %v787 = vunpack.c.h.b16 %v742
    %v788 = vunpack.c.l.b16 %v743
    %v789 = vunpack.c.h.b16 %v743
    %v790 = vunpack.c.l.b16 %v744
    %v791 = vunpack.c.h.b16 %v744
    %v792 = vunpack.c.l.b16 %v745
    %v793 = vunpack.c.h.b16 %v745
    %v794 = vunpack.c.l.b16 %v746
    %v795 = vunpack.c.h.b16 %v746
    %v796 = vunpack.c.l.b16 %v747
    %v797 = vunpack.c.h.b16 %v747
    %v798 = vunpack.c.l.b16 %v748
    %v799 = vunpack.c.h.b16 %v748
    %v800 = vunpack.c.l.b16 %v749
    %v801 = vunpack.c.h.b16 %v749
    %v802 = vunpack.c.l.b16 %v750
    %v803 = vunpack.c.h.b16 %v750
    %v804 = vunpack.c.l.b16 %v751
    %v805 = vunpack.c.h.b16 %v751
    %v806 = vunpack.c.l.b16 %v752
    %v807 = vunpack.c.h.b16 %v752
    %v808 = vunpack.c.l.b16 %v753
    %v809 = vunpack.c.h.b16 %v753
    %v810 = vunpack.c.l.b16 %v754
    %v811 = vunpack.c.h.b16 %v754
    %v812 = vunpack.c.l.b16 %v755
    %v813 = vunpack.c.h.b16 %v755
    %v814 = vunpack.c.l.b16 %v756
    %v815 = vunpack.c.h.b16 %v756
    %v816 = vunpack.c.l.b16 %v757
    %v817 = vunpack.c.h.b16 %v757
    %v818 = vpack.c.b16 %v788, %v786
    %v819 = vpack.c.b16 %v789, %v787
    %v820 = vpack.c.b16 %v792, %v790
    %v821 = vpack.c.b16 %v793, %v791
    %v822 = vpack.c.b16 %v796, %v794
    %v823 = vpack.c.b16 %v797, %v795
    %v824 = vpack.c.b16 %v800, %v798
    %v825 = vpack.c.b16 %v801, %v799
    %v826 = vpack.c.b16 %v804, %v802
    %v827 = vpack.c.b16 %v805, %v803
    %v828 = vpack.c.b16 %v808, %v806
    %v829 = vpack.c.b16 %v809, %v807
    %v830 = vpack.c.b16 %v812, %v810
    %v831 = vpack.c.b16 %v813, %v811
    %v832 = vpack.c.b16 %v816, %v814
    %v833 = vpack.c.b16 %v817, %v815
    %850 = vmatprep.subr.bf16.mxu0 %v819
    %851 = vmatpush1.bf16.msra.mxu0 %v818
    %852 = vmatprep.subr.bf16.mxu0 %v821
    %853 = vmatpush1.bf16.msra.mxu0 %v820
    %854 = vmatprep.subr.bf16.mxu0 %v823
    %855 = vmatpush1.bf16.msra.mxu0 %v822
    %856 = vmatprep.subr.bf16.mxu0 %v825
    %857 = vmatpush1.bf16.msra.mxu0 %v824
    %858 = vmatprep.subr.bf16.mxu0 %v827
    %859 = vmatpush1.bf16.msra.mxu0 %v826
    %860 = vmatprep.subr.bf16.mxu0 %v829
    %861 = vmatpush1.bf16.msra.mxu0 %v828
    %862 = vmatprep.subr.bf16.mxu0 %v831
    %863 = vmatpush1.bf16.msra.mxu0 %v830
    %864 = vmatprep.subr.bf16.mxu0 %v833
    %865 = vmatpush1.bf16.msra.mxu0 %v832
    %866 = vmatprep.subr.bf16.mxu0 0
    %867 = vmatpush1.bf16.msra.mxu0 0
    %868 = vmatprep.subr.bf16.mxu0 0
    %869 = vmatpush1.bf16.msra.mxu0 0
    %870 = vmatprep.subr.bf16.mxu0 0
    %871 = vmatpush1.bf16.msra.mxu0 0
    %872 = vmatprep.subr.bf16.mxu0 0
    %873 = vmatpush1.bf16.msra.mxu0 0
    %874 = vmatprep.subr.bf16.mxu0 0
    %875 = vmatpush1.bf16.msra.mxu0 0
    %876 = vmatprep.subr.bf16.mxu0 0
    %877 = vmatpush1.bf16.msra.mxu0 0
    %878 = vmatprep.subr.bf16.mxu0 0
    %879 = vmatpush1.bf16.msra.mxu0 0
    %880 = vmatprep.subr.bf16.mxu0 0
    %881 = vmatpush1.bf16.msra.mxu0 0
    %882 = vmatprep.mubr.bf16.mxu0 0
    %883 = vmatmul.mubr.bf16.gmra.mrb[0].mxu0 %v741
    %v884 = vpop.f32.mrb[0].mxu0
    %v885 = vadd.f32 %v763, %v884
    %v886 = vpop.f32.mrb[0].mxu0
    %v887 = vadd.f32 %v767, %v886
    %v888 = vpop.f32.mrb[0].mxu0
    %v889 = vadd.f32 %v763, %v888
    %v890 = vpop.f32.mrb[0].mxu0
    %v891 = vadd.f32 %v767, %v890
    %892 = vdwg.mxu0
    %893 = vst [vmem:[#allocation16] sm:$0xff] %v885
    %894 = vst [vmem:[#allocation16 + $0x8] sm:$0xff] %v887
    %895 = vst [vmem:[#allocation16 + $0x10] sm:$0xff] %v889
    %896 = vst [vmem:[#allocation16 + $0x18] sm:$0xff] %v891
    %v897 = vlaneseq
    %v898 = vshrl.u32 %v897, 7
    %v899 = vadd.s32 %v898, 8
    %s900 = smul.u32 0, 16
    %v901 = vstv %s900
    %v902 = vadd.s32 %v898, %v901
    %v903 = vadd.s32 %v899, %v901
    %vm904 = vcmp.lt.s32.totalorder %v902, 16
    %vm905 = vcmp.lt.s32.totalorder %v903, 16
    %v906 = vsel %vm904, 1, 0
    %v907 = vsel %vm905, 1, 0
    %v908 = vcvt.s32.f32 %v906
    %v909 = vcvt.s32.f32 %v907
    %v910 = vadd.f32 %v493, 1.0
    %v911 = vadd.f32 %v497, 1.0
    %v912 = vmul.f32 %v491, %v491
    %v913 = vmul.f32 %v495, %v495
    %v914 = vsub.f32 %v910, %v912
    %v915 = vsub.f32 %v911, %v913
    %v916 = vmul.f32 %v502, %v502
    %v917 = vmul.f32 %v504, %v504
    %v918 = vsub.f32 %v914, %v916
    %v919 = vsub.f32 %v915, %v917
    %v920 = vmul.f32 %v918, %v908
    %v921 = vmul.f32 %v919, %v909
    %v922 = vadd.f32 %v920, 0.0
    %v923 = vadd.f32 %v922, %v921
    %924 = vst [vmem:[#allocation17] sm:$0xff] %v923
    // Predicated region
    $region82: #{tpu_custom_call.1} parent=1 // pred_check
      _
    $region83: #{tpu_custom_call.1} parent=1 // pred_check_branch
      %926 = sbr.rel (0) target = $region85
    $region84: #{tpu_custom_call.1} parent=1 // pred_region
      %s928 = ssub.s32 512, 512
      %929 = vsyncadd [#allocation4], %s928
      %s930 = sshll.u32 [#allocation16], 4
      %s931 = int_to_ptr.vmem [resolvable:$true] %s930
      %936 = dma.vmem_to_hbm [thread:$0]  %s931, 512, %s12, [#allocation4], 256, 256, 16
    $region85: #{tpu_custom_call.1} parent=1 // pred_fallthru
      _
    // Predicated region
    $region86: #{tpu_custom_call.1} parent=1 // pred_check
      _
    $region87: #{tpu_custom_call.1} parent=1 // pred_check_branch
      %938 = sbr.rel (0) target = $region89
    $region88: #{tpu_custom_call.1} parent=1 // pred_region
      %s940 = ssub.s32 128, 128
      %941 = vsyncadd [#allocation18], %s940
      %s943 = sshll.u32 [#allocation17], 4
      %s944 = int_to_ptr.vmem [resolvable:$true] %s943
      %946 = dma.vmem_to_hbm [thread:$0]  %s944, 128, %s13, [#allocation18]
    $region89: #{tpu_custom_call.1} parent=1 // pred_fallthru
      _
    // Predicated region
    $region90: #{tpu_custom_call.1} parent=1 // pred_check
      _
    $region91: #{tpu_custom_call.1} parent=1 // pred_check_branch
      %948 = sbr.rel (0) target = $region93
    $region92: #{tpu_custom_call.1} parent=1 // pred_region
      %949 = dma.done [#allocation4], 512
    $region93: #{tpu_custom_call.1} parent=1 // pred_fallthru
      _
    // Predicated region
    $region94: #{tpu_custom_call.1} parent=1 // pred_check
      _
    $region95: #{tpu_custom_call.1} parent=1 // pred_check_branch
      %951 = sbr.rel (0) target = $region97
    $region96: #{tpu_custom_call.1} parent=1 // pred_region
      %952 = dma.done [#allocation18], 128
    $region97: #{tpu_custom_call.1} parent=1 // pred_fallthru
      _
    %953 = vsyncpa [#allocation3], 1
    %954 = vsyncpa [#allocation6], 1
    %955 = vsyncpa [#allocation9], 1
    %956 = vsyncpa [#allocation12], 1
    %957 = vsyncpa [#allocation15], 1
    %958 = vsyncpa [#allocation4], 1
    %959 = vsyncpa [#allocation18], 1

</llo_original>
